<compile_context>
chip_gen: v7x
topology: tpu7x:2x2x1
jax: 0.10.0
libtpu: 0.0.40
codegen_flags: <defaults>
</compile_context>

<pallas_src>
import functools

import jax
import jax.numpy as jnp
from jax.experimental import pallas as pl
from jax.experimental.pallas import tpu as pltpu

IN_DIM = 128 + 2   # 130
HID = 200
OUT_DIM = 1

PAD_IN = 256       # 130 padded up to a lane-aligned / MXU-friendly width
PAD_HID = 256      # 200 padded up to 256


def decoder_kernel(x_ref,
                   w1_ref, b1_ref,
                   w2_ref, b2_ref,
                   w3_ref, b3_ref,
                   w4_ref, b4_ref,
                   w5_ref, b5_ref,
                   o_ref):
    # Fully fused MLP. MXU inputs are bf16, accumulation + elementwise in f32.
    x = x_ref[...].astype(jnp.bfloat16)

    h = jnp.dot(x, w1_ref[...], preferred_element_type=jnp.float32) + b1_ref[...]
    h = jnp.maximum(h, 0.0)

    h = jnp.dot(h.astype(jnp.bfloat16), w2_ref[...],
                preferred_element_type=jnp.float32) + b2_ref[...]
    h = jnp.maximum(h, 0.0)

    h = jnp.dot(h.astype(jnp.bfloat16), w3_ref[...],
                preferred_element_type=jnp.float32) + b3_ref[...]
    h = jnp.maximum(h, 0.0)

    h = jnp.dot(h.astype(jnp.bfloat16), w4_ref[...],
                preferred_element_type=jnp.float32) + b4_ref[...]
    h = jnp.maximum(h, 0.0)

    logits = jnp.dot(h.astype(jnp.bfloat16), w5_ref[...],
                     preferred_element_type=jnp.float32) + b5_ref[...]
    o_ref[...] = jax.nn.sigmoid(logits).astype(o_ref.dtype)


def _choose_block_b(B):
    """Batch tile: single block for small/medium B, 256/512-row tiles otherwise."""
    if B <= 512:
        return B                 # one grid step: no pipeline / per-step overhead
    if B % 512 == 0:
        return 512
    if B % 256 == 0:
        return 256
    return 512                   # batch will be zero-padded up to a multiple


@jax.jit
def decoder_forward(x, padded_params):
    """x: (B, IN_DIM) f32.  padded_params: output of prepare_params()."""
    B = x.shape[0]
    (w1, b1), (w2, b2), (w3, b3), (w4, b4), (w5, b5) = padded_params

    block_b = _choose_block_b(B)
    Bp = ((B + block_b - 1) // block_b) * block_b

    # Pad features to 256 lanes (and batch rows to a tile multiple if needed).
    x_p = jnp.pad(x, ((0, Bp - B), (0, PAD_IN - x.shape[1])))

    grid = (Bp // block_b,)

    def full_spec(arr):
        return pl.BlockSpec(arr.shape, lambda i: (0,) * arr.ndim)

    in_specs = [pl.BlockSpec((block_b, PAD_IN), lambda i: (i, 0))]
    for p in (w1, b1, w2, b2, w3, b3, w4, b4, w5, b5):
        in_specs.append(full_spec(p))

    out_spec = pl.BlockSpec((block_b, OUT_DIM), lambda i: (i, 0))

    out = pl.pallas_call(
        decoder_kernel,
        out_shape=jax.ShapeDtypeStruct((Bp, OUT_DIM), jnp.float32),
        grid_spec=pltpu.PrefetchScalarGridSpec(
            num_scalar_prefetch=0,
            grid=grid,
            in_specs=in_specs,
            out_specs=out_spec,
        ),
        compiler_params=pltpu.CompilerParams(
            dimension_semantics=("parallel",)),
    )(x_p, w1, b1, w2, b2, w3, b3, w4, b4, w5, b5)

    return out[:B]


def init_params(key):
    """Deterministic Linear params (PyTorch-default-style init).

    Weights stored as (in, out); biases as (1, out). f32, unpadded.
    """
    dims = [(IN_DIM, HID), (HID, HID), (HID, HID), (HID, HID), (HID, OUT_DIM)]
    params = []
    for (fan_in, fan_out) in dims:
        kw, kb, key = jax.random.split(key, 3)
        bound = 1.0 / jnp.sqrt(fan_in)
        w = jax.random.uniform(kw, (fan_in, fan_out), jnp.float32, -bound, bound)
        b = jax.random.uniform(kb, (1, fan_out), jnp.float32, -bound, bound)
        params.append((w, b))
    return params


def prepare_params(params, weight_dtype=jnp.bfloat16):
    """Zero-pad feature dims to 256 and cast weights (not biases) for the MXU.

    Zero padding keeps the math identical: padded hidden units get zero
    weights and zero bias, so their activations are exactly 0 and contribute
    nothing downstream.
    """
    (w1, b1), (w2, b2), (w3, b3), (w4, b4), (w5, b5) = params

    def pad2(a, rows, cols):
        return jnp.pad(a, ((0, rows - a.shape[0]), (0, cols - a.shape[1])))

    w1p = pad2(w1, PAD_IN, PAD_HID).astype(weight_dtype)
    b1p = pad2(b1, 1, PAD_HID)
    w2p = pad2(w2, PAD_HID, PAD_HID).astype(weight_dtype)
    b2p = pad2(b2, 1, PAD_HID)
    w3p = pad2(w3, PAD_HID, PAD_HID).astype(weight_dtype)
    b3p = pad2(b3, 1, PAD_HID)
    w4p = pad2(w4, PAD_HID, PAD_HID).astype(weight_dtype)
    b4p = pad2(b4, 1, PAD_HID)
    w5p = pad2(w5, PAD_HID, OUT_DIM).astype(weight_dtype)
    b5p = b5  # (1, 1)
    return ((w1p, b1p), (w2p, b2p), (w3p, b3p), (w4p, b4p), (w5p, b5p))


def reference_forward(x, params):
    """Pure-JAX f32 reference of the original (unpadded) network."""
    h = x
    for (w, b) in params[:-1]:
        h = jnp.maximum(h @ w + b, 0.0)
    w, b = params[-1]
    return jax.nn.sigmoid(h @ w + b)


if __name__ == "__main__":
    key = jax.random.PRNGKey(0)
    kx, kp = jax.random.split(key)

    B = 16  # small test batch
    x = jax.random.normal(kx, (B, IN_DIM), jnp.float32)
    params = init_params(kp)
    padded_params = prepare_params(params)

    out = decoder_forward(x, padded_params)
    out = jax.block_until_ready(out)

    ref = reference_forward(x, params)
    assert out.shape == (B, OUT_DIM), out.shape
    # bf16 MXU inputs -> loosened tolerance vs. the f32 reference.
    max_err = float(jnp.max(jnp.abs(out - ref)))
    assert max_err < 2e-2, max_err

    print("KERNEL_OK")
</pallas_src>

<mosaic_0001>
module attributes {stable_mosaic.version = 11 : i64} {
  func.func @decoder_kernel(%arg0: i32, %arg1: memref<16x256xf32, #tpu.memory_space<vmem>>, %arg2: memref<256x256xbf16, #tpu.memory_space<vmem>>, %arg3: memref<1x256xf32, #tpu.memory_space<vmem>>, %arg4: memref<256x256xbf16, #tpu.memory_space<vmem>>, %arg5: memref<1x256xf32, #tpu.memory_space<vmem>>, %arg6: memref<256x256xbf16, #tpu.memory_space<vmem>>, %arg7: memref<1x256xf32, #tpu.memory_space<vmem>>, %arg8: memref<256x256xbf16, #tpu.memory_space<vmem>>, %arg9: memref<1x256xf32, #tpu.memory_space<vmem>>, %arg10: memref<256x1xbf16, #tpu.memory_space<vmem>>, %arg11: memref<1x1xf32, #tpu.memory_space<vmem>>, %arg12: memref<16x1xf32, #tpu.memory_space<vmem>>) attributes {dimension_semantics = [#tpu.dimension_semantics<parallel>], iteration_bounds = array<i64: 1>, scalar_prefetch = 0 : i64, scratch_operands = 0 : i64, tpu.core_type = #tpu.core_type<tc>, window_params = [{transform_indices = @transform_0, window_bounds = array<i64: 16, 256>}, {pipeline_mode = #tpu.pipeline_mode<synchronous>, transform_indices = @transform_1, window_bounds = array<i64: 256, 256>}, {pipeline_mode = #tpu.pipeline_mode<synchronous>, transform_indices = @transform_2, window_bounds = array<i64: 1, 256>}, {pipeline_mode = #tpu.pipeline_mode<synchronous>, transform_indices = @transform_3, window_bounds = array<i64: 256, 256>}, {pipeline_mode = #tpu.pipeline_mode<synchronous>, transform_indices = @transform_4, window_bounds = array<i64: 1, 256>}, {pipeline_mode = #tpu.pipeline_mode<synchronous>, transform_indices = @transform_5, window_bounds = array<i64: 256, 256>}, {pipeline_mode = #tpu.pipeline_mode<synchronous>, transform_indices = @transform_6, window_bounds = array<i64: 1, 256>}, {pipeline_mode = #tpu.pipeline_mode<synchronous>, transform_indices = @transform_7, window_bounds = array<i64: 256, 256>}, {pipeline_mode = #tpu.pipeline_mode<synchronous>, transform_indices = @transform_8, window_bounds = array<i64: 1, 256>}, {pipeline_mode = #tpu.pipeline_mode<synchronous>, transform_indices = @transform_9, window_bounds = array<i64: 256, 1>}, {pipeline_mode = #tpu.pipeline_mode<synchronous>, transform_indices = @transform_10, window_bounds = array<i64: 1, 1>}, {transform_indices = @transform_11, window_bounds = array<i64: 16, 1>}]} {
    %c0 = arith.constant 0 : index
    %c0_0 = arith.constant 0 : index
    %0 = vector.load %arg1[%c0, %c0_0] : memref<16x256xf32, #tpu.memory_space<vmem>>, vector<16x256xf32>
    %1 = arith.truncf %0 : vector<16x256xf32> to vector<16x256xbf16>
    %c0_1 = arith.constant 0 : index
    %c0_2 = arith.constant 0 : index
    %2 = vector.load %arg2[%c0_1, %c0_2] : memref<256x256xbf16, #tpu.memory_space<vmem>>, vector<256x256xbf16>
    %cst = arith.constant dense<0.000000e+00> : vector<16x256xf32>
    %3 = tpu.matmul %1, %2, %cst {dimension_numbers = #tpu.dot_dimension_numbers<[1], [0], [0], [1], [0, 0, 1, 1], [], []>} : vector<16x256xbf16>, vector<256x256xbf16>, vector<16x256xf32> -> vector<16x256xf32>
    %c0_3 = arith.constant 0 : index
    %c0_4 = arith.constant 0 : index
    %4 = vector.load %arg3[%c0_3, %c0_4] : memref<1x256xf32, #tpu.memory_space<vmem>>, vector<1x256xf32>
    %5 = vector.broadcast %4 : vector<1x256xf32> to vector<16x256xf32>
    %6 = arith.addf %3, %5 : vector<16x256xf32>
    %cst_5 = arith.constant 0.000000e+00 : f32
    %7 = vector.broadcast %cst_5 : f32 to vector<16x256xf32>
    %8 = arith.maximumf %6, %7 : vector<16x256xf32>
    %9 = arith.truncf %8 : vector<16x256xf32> to vector<16x256xbf16>
    %c0_6 = arith.constant 0 : index
    %c0_7 = arith.constant 0 : index
    %10 = vector.load %arg4[%c0_6, %c0_7] : memref<256x256xbf16, #tpu.memory_space<vmem>>, vector<256x256xbf16>
    %cst_8 = arith.constant dense<0.000000e+00> : vector<16x256xf32>
    %11 = tpu.matmul %9, %10, %cst_8 {dimension_numbers = #tpu.dot_dimension_numbers<[1], [0], [0], [1], [0, 0, 1, 1], [], []>} : vector<16x256xbf16>, vector<256x256xbf16>, vector<16x256xf32> -> vector<16x256xf32>
    %c0_9 = arith.constant 0 : index
    %c0_10 = arith.constant 0 : index
    %12 = vector.load %arg5[%c0_9, %c0_10] : memref<1x256xf32, #tpu.memory_space<vmem>>, vector<1x256xf32>
    %13 = vector.broadcast %12 : vector<1x256xf32> to vector<16x256xf32>
    %14 = arith.addf %11, %13 : vector<16x256xf32>
    %cst_11 = arith.constant 0.000000e+00 : f32
    %15 = vector.broadcast %cst_11 : f32 to vector<16x256xf32>
    %16 = arith.maximumf %14, %15 : vector<16x256xf32>
    %17 = arith.truncf %16 : vector<16x256xf32> to vector<16x256xbf16>
    %c0_12 = arith.constant 0 : index
    %c0_13 = arith.constant 0 : index
    %18 = vector.load %arg6[%c0_12, %c0_13] : memref<256x256xbf16, #tpu.memory_space<vmem>>, vector<256x256xbf16>
    %cst_14 = arith.constant dense<0.000000e+00> : vector<16x256xf32>
    %19 = tpu.matmul %17, %18, %cst_14 {dimension_numbers = #tpu.dot_dimension_numbers<[1], [0], [0], [1], [0, 0, 1, 1], [], []>} : vector<16x256xbf16>, vector<256x256xbf16>, vector<16x256xf32> -> vector<16x256xf32>
    %c0_15 = arith.constant 0 : index
    %c0_16 = arith.constant 0 : index
    %20 = vector.load %arg7[%c0_15, %c0_16] : memref<1x256xf32, #tpu.memory_space<vmem>>, vector<1x256xf32>
    %21 = vector.broadcast %20 : vector<1x256xf32> to vector<16x256xf32>
    %22 = arith.addf %19, %21 : vector<16x256xf32>
    %cst_17 = arith.constant 0.000000e+00 : f32
    %23 = vector.broadcast %cst_17 : f32 to vector<16x256xf32>
    %24 = arith.maximumf %22, %23 : vector<16x256xf32>
    %25 = arith.truncf %24 : vector<16x256xf32> to vector<16x256xbf16>
    %c0_18 = arith.constant 0 : index
    %c0_19 = arith.constant 0 : index
    %26 = vector.load %arg8[%c0_18, %c0_19] : memref<256x256xbf16, #tpu.memory_space<vmem>>, vector<256x256xbf16>
    %cst_20 = arith.constant dense<0.000000e+00> : vector<16x256xf32>
    %27 = tpu.matmul %25, %26, %cst_20 {dimension_numbers = #tpu.dot_dimension_numbers<[1], [0], [0], [1], [0, 0, 1, 1], [], []>} : vector<16x256xbf16>, vector<256x256xbf16>, vector<16x256xf32> -> vector<16x256xf32>
    %c0_21 = arith.constant 0 : index
    %c0_22 = arith.constant 0 : index
    %28 = vector.load %arg9[%c0_21, %c0_22] : memref<1x256xf32, #tpu.memory_space<vmem>>, vector<1x256xf32>
    %29 = vector.broadcast %28 : vector<1x256xf32> to vector<16x256xf32>
    %30 = arith.addf %27, %29 : vector<16x256xf32>
    %cst_23 = arith.constant 0.000000e+00 : f32
    %31 = vector.broadcast %cst_23 : f32 to vector<16x256xf32>
    %32 = arith.maximumf %30, %31 : vector<16x256xf32>
    %33 = arith.truncf %32 : vector<16x256xf32> to vector<16x256xbf16>
    %c0_24 = arith.constant 0 : index
    %c0_25 = arith.constant 0 : index
    %34 = vector.load %arg10[%c0_24, %c0_25] : memref<256x1xbf16, #tpu.memory_space<vmem>>, vector<256x1xbf16>
    %cst_26 = arith.constant dense<0.000000e+00> : vector<16x1xf32>
    %35 = tpu.matmul %33, %34, %cst_26 {dimension_numbers = #tpu.dot_dimension_numbers<[1], [0], [0], [1], [0, 0, 1, 1], [], []>} : vector<16x256xbf16>, vector<256x1xbf16>, vector<16x1xf32> -> vector<16x1xf32>
    %c0_27 = arith.constant 0 : index
    %c0_28 = arith.constant 0 : index
    %36 = vector.load %arg11[%c0_27, %c0_28] : memref<1x1xf32, #tpu.memory_space<vmem>>, vector<1x1xf32>
    %37 = vector.broadcast %36 : vector<1x1xf32> to vector<16x1xf32>
    %38 = arith.addf %35, %37 : vector<16x1xf32>
    %39 = arith.negf %38 : vector<16x1xf32>
    %40 = math.exp %39 : vector<16x1xf32>
    %cst_29 = arith.constant 1.000000e+00 : f32
    %41 = vector.broadcast %cst_29 : f32 to vector<16x1xf32>
    %42 = arith.addf %41, %40 : vector<16x1xf32>
    %43 = arith.divf %41, %42 : vector<16x1xf32>
    %c0_30 = arith.constant 0 : index
    %c0_31 = arith.constant 0 : index
    %44 = vector.load %arg12[%c0_30, %c0_31] : memref<16x1xf32, #tpu.memory_space<vmem>>, vector<16x1xf32>
    tpu.vector_store %arg12[%c0_30, %c0_31], %43 {strides = array<i32>} : memref<16x1xf32, #tpu.memory_space<vmem>>, vector<16x1xf32>,
    return
  }
  func.func @transform_0(%arg0: i32) -> (i32, i32) {
    %c0_i32 = arith.constant 0 : i32
    %c0_i32_0 = arith.constant 0 : i32
    return %arg0, %c0_i32 : i32, i32
  }
  func.func @transform_1(%arg0: i32) -> (i32, i32) {
    %c0_i32 = arith.constant 0 : i32
    %c0_i32_0 = arith.constant 0 : i32
    %c0_i32_1 = arith.constant 0 : i32
    return %c0_i32, %c0_i32_0 : i32, i32
  }
  func.func @transform_2(%arg0: i32) -> (i32, i32) {
    %c0_i32 = arith.constant 0 : i32
    %c0_i32_0 = arith.constant 0 : i32
    %c0_i32_1 = arith.constant 0 : i32
    return %c0_i32, %c0_i32_0 : i32, i32
  }
  func.func @transform_3(%arg0: i32) -> (i32, i32) {
    %c0_i32 = arith.constant 0 : i32
    %c0_i32_0 = arith.constant 0 : i32
    %c0_i32_1 = arith.constant 0 : i32
    return %c0_i32, %c0_i32_0 : i32, i32
  }
  func.func @transform_4(%arg0: i32) -> (i32, i32) {
    %c0_i32 = arith.constant 0 : i32
    %c0_i32_0 = arith.constant 0 : i32
    %c0_i32_1 = arith.constant 0 : i32
    return %c0_i32, %c0_i32_0 : i32, i32
  }
  func.func @transform_5(%arg0: i32) -> (i32, i32) {
    %c0_i32 = arith.constant 0 : i32
    %c0_i32_0 = arith.constant 0 : i32
    %c0_i32_1 = arith.constant 0 : i32
    return %c0_i32, %c0_i32_0 : i32, i32
  }
  func.func @transform_6(%arg0: i32) -> (i32, i32) {
    %c0_i32 = arith.constant 0 : i32
    %c0_i32_0 = arith.constant 0 : i32
    %c0_i32_1 = arith.constant 0 : i32
    return %c0_i32, %c0_i32_0 : i32, i32
  }
  func.func @transform_7(%arg0: i32) -> (i32, i32) {
    %c0_i32 = arith.constant 0 : i32
    %c0_i32_0 = arith.constant 0 : i32
    %c0_i32_1 = arith.constant 0 : i32
    return %c0_i32, %c0_i32_0 : i32, i32
  }
  func.func @transform_8(%arg0: i32) -> (i32, i32) {
    %c0_i32 = arith.constant 0 : i32
    %c0_i32_0 = arith.constant 0 : i32
    %c0_i32_1 = arith.constant 0 : i32
    return %c0_i32, %c0_i32_0 : i32, i32
  }
  func.func @transform_9(%arg0: i32) -> (i32, i32) {
    %c0_i32 = arith.constant 0 : i32
    %c0_i32_0 = arith.constant 0 : i32
    %c0_i32_1 = arith.constant 0 : i32
    return %c0_i32, %c0_i32_0 : i32, i32
  }
  func.func @transform_10(%arg0: i32) -> (i32, i32) {
    %c0_i32 = arith.constant 0 : i32
    %c0_i32_0 = arith.constant 0 : i32
    %c0_i32_1 = arith.constant 0 : i32
    return %c0_i32, %c0_i32_0 : i32, i32
  }
  func.func @transform_11(%arg0: i32) -> (i32, i32) {
    %c0_i32 = arith.constant 0 : i32
    %c0_i32_0 = arith.constant 0 : i32
    return %arg0, %c0_i32 : i32, i32
  }
}

</mosaic_0001>

<llo_original>
// kernel: decoder_forward.1
$region0: #{decoder_forward.1}
  #allocation0 [shape = 'u32[]', space=smem, size = 0x4, offset = 0x4, fixed_abs, tag = 'smem constant byte address 0x4 - core index']
  #allocation1 [shape = 'u32[144,128]{1,0:T(1,128)}', space=vmem, size = 0x12000, scoped, tag = 'internal scratch']
  #allocation2 [shape = 'f32[1,1]{1,0:T(1,128)S(1)}', space=vmem, size = 0x200, scoped, tag = 'scoped memory for decoder_forward.1']
  %s0 = inlined_call_operand.vmem [shape: f32[16,256], index: 0, kind: input, shape index: {}]
  %s1 = inlined_call_operand.hbm [shape: bf16[256,256], index: 1, kind: input, shape index: {}]
  %s2 = inlined_call_operand.vmem [shape: f32[1,256], index: 2, kind: input, shape index: {}]
  %s3 = inlined_call_operand.hbm [shape: bf16[256,256], index: 3, kind: input, shape index: {}]
  %s4 = inlined_call_operand.vmem [shape: f32[1,256], index: 4, kind: input, shape index: {}]
  %s5 = inlined_call_operand.hbm [shape: bf16[256,256], index: 5, kind: input, shape index: {}]
  %s6 = inlined_call_operand.vmem [shape: f32[1,256], index: 6, kind: input, shape index: {}]
  %s7 = inlined_call_operand.hbm [shape: bf16[256,256], index: 7, kind: input, shape index: {}]
  %s8 = inlined_call_operand.vmem [shape: f32[1,256], index: 8, kind: input, shape index: {}]
  %s9 = inlined_call_operand.vmem [shape: bf16[256,1], index: 9, kind: input, shape index: {}]
  %s10 = inlined_call_operand.<no memory space> [shape: f32[1,1], index: 10, kind: input, shape index: {}]
  %s11 = inlined_call_operand.vmem [shape: f32[16,1], index: 11, kind: output, shape index: {}]
  %s12 = sld [smem:[#allocation0]]
  $region70: #{decoder_forward.1} parent=0
    _
  %s14 = ssub.s32 1, %s12
  %s15 = scalar_select 0, %s14, %s12
  %v16 = vstv %s10
  %17 = vst [vmem:[#allocation2] sm:$0x1] %v16
  $region1: #{decoder_forward.1} parent=0
    #allocation3 [shape = 'u8[131072]{0}', space=vmem, size = 0x20000, scoped, tag = 'input window, operand 1, single buffered']
    #allocation4 [shape = 's32[1]{0}', space=sflag, size = 0x4, scoped, tag = 'scoped memory for decoder_forward.1']
    #allocation5 [shape = 'u8[131072]{0}', space=vmem, size = 0x20000, scoped, tag = 'input window, operand 3, single buffered']
    #allocation6 [shape = 's32[1]{0}', space=sflag, size = 0x4, scoped, tag = 'scoped memory for decoder_forward.1']
    #allocation7 [shape = 'u8[131072]{0}', space=vmem, size = 0x20000, scoped, tag = 'input window, operand 5, single buffered']
    #allocation8 [shape = 'u8[131072]{0}', space=vmem, size = 0x20000, scoped, tag = 'input window, operand 7, single buffered']
    #allocation9 [shape = 's32[1]{0}', space=sflag, size = 0x4, scoped, tag = 'scoped memory for decoder_forward.1']
    %18 = vsyncpa [#allocation4], 0
    %19 = vsyncpa [#allocation6], 0
    %20 = vsyncpa [#allocation9], 0
    // Predicated region
    $region2: #{decoder_forward.1} parent=1 // pred_check
      _
    $region3: #{decoder_forward.1} parent=1 // pred_check_branch
      %22 = sbr.rel (0) target = $region5
    $region4: #{decoder_forward.1} parent=1 // pred_region
      _
    $region5: #{decoder_forward.1} parent=1 // pred_fallthru
      _
    // Predicated region
    $region6: #{decoder_forward.1} parent=1 // pred_check
      _
    $region7: #{decoder_forward.1} parent=1 // pred_check_branch
      %24 = sbr.rel (0) target = $region9
    $region8: #{decoder_forward.1} parent=1 // pred_region
      %s26 = ssub.s32 4096, 4096
      %27 = vsyncadd [#allocation4], %s26
      %s28 = sshll.u32 [#allocation3], 4
      %s29 = int_to_ptr.vmem [resolvable:$true] %s28
      %34 = dma.hbm_to_vmem [thread:$0]  %s1, 4096, %s29, [#allocation4], 128, 128, 8
    $region9: #{decoder_forward.1} parent=1 // pred_fallthru
      _
    // Predicated region
    $region10: #{decoder_forward.1} parent=1 // pred_check
      _
    $region11: #{decoder_forward.1} parent=1 // pred_check_branch
      %36 = sbr.rel (0) target = $region13
    $region12: #{decoder_forward.1} parent=1 // pred_region
      _
    $region13: #{decoder_forward.1} parent=1 // pred_fallthru
      _
    // Predicated region
    $region14: #{decoder_forward.1} parent=1 // pred_check
      _
    $region15: #{decoder_forward.1} parent=1 // pred_check_branch
      %38 = sbr.rel (0) target = $region17
    $region16: #{decoder_forward.1} parent=1 // pred_region
      %s40 = ssub.s32 4096, 4096
      %41 = vsyncadd [#allocation6], %s40
      %s42 = sshll.u32 [#allocation5], 4
      %s43 = int_to_ptr.vmem [resolvable:$true] %s42
      %48 = dma.hbm_to_vmem [thread:$0]  %s3, 4096, %s43, [#allocation6], 128, 128, 8
    $region17: #{decoder_forward.1} parent=1 // pred_fallthru
      _
    // Predicated region
    $region18: #{decoder_forward.1} parent=1 // pred_check
      _
    $region19: #{decoder_forward.1} parent=1 // pred_check_branch
      %50 = sbr.rel (0) target = $region21
    $region20: #{decoder_forward.1} parent=1 // pred_region
      _
    $region21: #{decoder_forward.1} parent=1 // pred_fallthru
      _
    // Predicated region
    $region22: #{decoder_forward.1} parent=1 // pred_check
      _
    $region23: #{decoder_forward.1} parent=1 // pred_check_branch
      %52 = sbr.rel (0) target = $region25
    $region24: #{decoder_forward.1} parent=1 // pred_region
      %s54 = ssub.s32 4096, 4096
      %55 = vsyncadd [#allocation6], %s54
      %s56 = sshll.u32 [#allocation7], 4
      %s57 = int_to_ptr.vmem [resolvable:$true] %s56
      %62 = dma.hbm_to_vmem [thread:$0]  %s5, 4096, %s57, [#allocation6], 128, 128, 8
    $region25: #{decoder_forward.1} parent=1 // pred_fallthru
      _
    // Predicated region
    $region26: #{decoder_forward.1} parent=1 // pred_check
      _
    $region27: #{decoder_forward.1} parent=1 // pred_check_branch
      %64 = sbr.rel (0) target = $region29
    $region28: #{decoder_forward.1} parent=1 // pred_region
      _
    $region29: #{decoder_forward.1} parent=1 // pred_fallthru
      _
    // Predicated region
    $region30: #{decoder_forward.1} parent=1 // pred_check
      _
    $region31: #{decoder_forward.1} parent=1 // pred_check_branch
      %66 = sbr.rel (0) target = $region33
    $region32: #{decoder_forward.1} parent=1 // pred_region
      %s68 = ssub.s32 4096, 4096
      %69 = vsyncadd [#allocation9], %s68
      %s70 = sshll.u32 [#allocation8], 4
      %s71 = int_to_ptr.vmem [resolvable:$true] %s70
      %76 = dma.hbm_to_vmem [thread:$0]  %s7, 4096, %s71, [#allocation9], 128, 128, 8
    $region33: #{decoder_forward.1} parent=1 // pred_fallthru
      _
    // Predicated region
    $region34: #{decoder_forward.1} parent=1 // pred_check
      _
    $region35: #{decoder_forward.1} parent=1 // pred_check_branch
      %78 = sbr.rel (0) target = $region37
    $region36: #{decoder_forward.1} parent=1 // pred_region
      _
    $region37: #{decoder_forward.1} parent=1 // pred_fallthru
      _
    // Predicated region
    $region38: #{decoder_forward.1} parent=1 // pred_check
      _
    $region39: #{decoder_forward.1} parent=1 // pred_check_branch
      %80 = sbr.rel (0) target = $region41
    $region40: #{decoder_forward.1} parent=1 // pred_region
      _
    $region41: #{decoder_forward.1} parent=1 // pred_fallthru
      _
    // Predicated region
    $region42: #{decoder_forward.1} parent=1 // pred_check
      _
    $region43: #{decoder_forward.1} parent=1 // pred_check_branch
      %82 = sbr.rel (0) target = $region45
    $region44: #{decoder_forward.1} parent=1 // pred_region
      _
    $region45: #{decoder_forward.1} parent=1 // pred_fallthru
      _
    // Predicated region
    $region46: #{decoder_forward.1} parent=1 // pred_check
      _
    $region47: #{decoder_forward.1} parent=1 // pred_check_branch
      %84 = sbr.rel (0) target = $region49
    $region48: #{decoder_forward.1} parent=1 // pred_region
      %85 = dma.done [#allocation4], 4096
    $region49: #{decoder_forward.1} parent=1 // pred_fallthru
      _
    // Predicated region
    $region50: #{decoder_forward.1} parent=1 // pred_check
      _
    $region51: #{decoder_forward.1} parent=1 // pred_check_branch
      %87 = sbr.rel (0) target = $region53
    $region52: #{decoder_forward.1} parent=1 // pred_region
      %88 = dma.done [#allocation6], 4096
    $region53: #{decoder_forward.1} parent=1 // pred_fallthru
      _
    // Predicated region
    $region54: #{decoder_forward.1} parent=1 // pred_check
      _
    $region55: #{decoder_forward.1} parent=1 // pred_check_branch
      %90 = sbr.rel (0) target = $region57
    $region56: #{decoder_forward.1} parent=1 // pred_region
      %91 = dma.done [#allocation6], 4096
    $region57: #{decoder_forward.1} parent=1 // pred_fallthru
      _
    // Predicated region
    $region58: #{decoder_forward.1} parent=1 // pred_check
      _
    $region59: #{decoder_forward.1} parent=1 // pred_check_branch
      %93 = sbr.rel (0) target = $region61
    $region60: #{decoder_forward.1} parent=1 // pred_region
      %94 = dma.done [#allocation9], 4096
    $region61: #{decoder_forward.1} parent=1 // pred_fallthru
      _
    %v96 = vld [vmem:[%s0] sm:$0xff]
    %v97 = vld [vmem:[%s0 + $0x8] sm:$0xff]
    %v98 = vld [vmem:[%s0 + $0x10] sm:$0xff]
    %v99 = vld [vmem:[%s0 + $0x18] sm:$0xff]
    %v100 = vpack.c.bf16 %v98, %v96
    %v101 = vpack.c.bf16 %v99, %v97
    %v102 = vld [vmem:[#allocation3] sm:$0xff]
    %v103 = vld [vmem:[#allocation3 + $0x8] sm:$0xff]
    %v104 = vld [vmem:[#allocation3 + $0x10] sm:$0xff]
    %v105 = vld [vmem:[#allocation3 + $0x18] sm:$0xff]
    %v106 = vld [vmem:[#allocation3 + $0x20] sm:$0xff]
    %v107 = vld [vmem:[#allocation3 + $0x28] sm:$0xff]
    %v108 = vld [vmem:[#allocation3 + $0x30] sm:$0xff]
    %v109 = vld [vmem:[#allocation3 + $0x38] sm:$0xff]
    %v110 = vld [vmem:[#allocation3 + $0x40] sm:$0xff]
    %v111 = vld [vmem:[#allocation3 + $0x48] sm:$0xff]
    %v112 = vld [vmem:[#allocation3 + $0x50] sm:$0xff]
    %v113 = vld [vmem:[#allocation3 + $0x58] sm:$0xff]
    %v114 = vld [vmem:[#allocation3 + $0x60] sm:$0xff]
    %v115 = vld [vmem:[#allocation3 + $0x68] sm:$0xff]
    %v116 = vld [vmem:[#allocation3 + $0x70] sm:$0xff]
    %v117 = vld [vmem:[#allocation3 + $0x78] sm:$0xff]
    %v118 = vld [vmem:[#allocation3 + $0x80] sm:$0xff]
    %v119 = vld [vmem:[#allocation3 + $0x88] sm:$0xff]
    %v120 = vld [vmem:[#allocation3 + $0x90] sm:$0xff]
    %v121 = vld [vmem:[#allocation3 + $0x98] sm:$0xff]
    %v122 = vld [vmem:[#allocation3 + $0xa0] sm:$0xff]
    %v123 = vld [vmem:[#allocation3 + $0xa8] sm:$0xff]
    %v124 = vld [vmem:[#allocation3 + $0xb0] sm:$0xff]
    %v125 = vld [vmem:[#allocation3 + $0xb8] sm:$0xff]
    %v126 = vld [vmem:[#allocation3 + $0xc0] sm:$0xff]
    %v127 = vld [vmem:[#allocation3 + $0xc8] sm:$0xff]
    %v128 = vld [vmem:[#allocation3 + $0xd0] sm:$0xff]
    %v129 = vld [vmem:[#allocation3 + $0xd8] sm:$0xff]
    %v130 = vld [vmem:[#allocation3 + $0xe0] sm:$0xff]
    %v131 = vld [vmem:[#allocation3 + $0xe8] sm:$0xff]
    %v132 = vld [vmem:[#allocation3 + $0xf0] sm:$0xff]
    %v133 = vld [vmem:[#allocation3 + $0xf8] sm:$0xff]
    %v134 = vld [vmem:[%s2] sm:$0x3]
    %v136 = vlaneseq
    %v137 = vshrl.u32 %v136, 7
    %v138 = vsub.s32 0, %v137
    %v139 = vrot.slane %v134, %v138
    %v140 = vlaneseq
    %v141 = vshrl.u32 %v140, 7
    %v142 = vsub.s32 1, %v141
    %v143 = vrot.slane %v134, %v142
    %v178 = vunpack.c.l.b16 %v102
    %v179 = vunpack.c.h.b16 %v102
    %v180 = vunpack.c.l.b16 %v103
    %v181 = vunpack.c.h.b16 %v103
    %v182 = vunpack.c.l.b16 %v104
    %v183 = vunpack.c.h.b16 %v104
    %v184 = vunpack.c.l.b16 %v105
    %v185 = vunpack.c.h.b16 %v105
    %v186 = vunpack.c.l.b16 %v106
    %v187 = vunpack.c.h.b16 %v106
    %v188 = vunpack.c.l.b16 %v107
    %v189 = vunpack.c.h.b16 %v107
    %v190 = vunpack.c.l.b16 %v108
    %v191 = vunpack.c.h.b16 %v108
    %v192 = vunpack.c.l.b16 %v109
    %v193 = vunpack.c.h.b16 %v109
    %v194 = vunpack.c.l.b16 %v110
    %v195 = vunpack.c.h.b16 %v110
    %v196 = vunpack.c.l.b16 %v111
    %v197 = vunpack.c.h.b16 %v111
    %v198 = vunpack.c.l.b16 %v112
    %v199 = vunpack.c.h.b16 %v112
    %v200 = vunpack.c.l.b16 %v113
    %v201 = vunpack.c.h.b16 %v113
    %v202 = vunpack.c.l.b16 %v114
    %v203 = vunpack.c.h.b16 %v114
    %v204 = vunpack.c.l.b16 %v115
    %v205 = vunpack.c.h.b16 %v115
    %v206 = vunpack.c.l.b16 %v116
    %v207 = vunpack.c.h.b16 %v116
    %v208 = vunpack.c.l.b16 %v117
    %v209 = vunpack.c.h.b16 %v117
    %v210 = vunpack.c.l.b16 %v118
    %v211 = vunpack.c.h.b16 %v118
    %v212 = vunpack.c.l.b16 %v119
    %v213 = vunpack.c.h.b16 %v119
    %v214 = vunpack.c.l.b16 %v120
    %v215 = vunpack.c.h.b16 %v120
    %v216 = vunpack.c.l.b16 %v121
    %v217 = vunpack.c.h.b16 %v121
    %v218 = vunpack.c.l.b16 %v122
    %v219 = vunpack.c.h.b16 %v122
    %v220 = vunpack.c.l.b16 %v123
    %v221 = vunpack.c.h.b16 %v123
    %v222 = vunpack.c.l.b16 %v124
    %v223 = vunpack.c.h.b16 %v124
    %v224 = vunpack.c.l.b16 %v125
    %v225 = vunpack.c.h.b16 %v125
    %v226 = vunpack.c.l.b16 %v126
    %v227 = vunpack.c.h.b16 %v126
    %v228 = vunpack.c.l.b16 %v127
    %v229 = vunpack.c.h.b16 %v127
    %v230 = vunpack.c.l.b16 %v128
    %v231 = vunpack.c.h.b16 %v128
    %v232 = vunpack.c.l.b16 %v129
    %v233 = vunpack.c.h.b16 %v129
    %v234 = vunpack.c.l.b16 %v130
    %v235 = vunpack.c.h.b16 %v130
    %v236 = vunpack.c.l.b16 %v131
    %v237 = vunpack.c.h.b16 %v131
    %v238 = vunpack.c.l.b16 %v132
    %v239 = vunpack.c.h.b16 %v132
    %v240 = vunpack.c.l.b16 %v133
    %v241 = vunpack.c.h.b16 %v133
    %v242 = vpack.c.b16 %v180, %v178
    %v243 = vpack.c.b16 %v181, %v179
    %v244 = vpack.c.b16 %v184, %v182
    %v245 = vpack.c.b16 %v185, %v183
    %v246 = vpack.c.b16 %v188, %v186
    %v247 = vpack.c.b16 %v189, %v187
    %v248 = vpack.c.b16 %v192, %v190
    %v249 = vpack.c.b16 %v193, %v191
    %v250 = vpack.c.b16 %v196, %v194
    %v251 = vpack.c.b16 %v197, %v195
    %v252 = vpack.c.b16 %v200, %v198
    %v253 = vpack.c.b16 %v201, %v199
    %v254 = vpack.c.b16 %v204, %v202
    %v255 = vpack.c.b16 %v205, %v203
    %v256 = vpack.c.b16 %v208, %v206
    %v257 = vpack.c.b16 %v209, %v207
    %v258 = vpack.c.b16 %v212, %v210
    %v259 = vpack.c.b16 %v213, %v211
    %v260 = vpack.c.b16 %v216, %v214
    %v261 = vpack.c.b16 %v217, %v215
    %v262 = vpack.c.b16 %v220, %v218
    %v263 = vpack.c.b16 %v221, %v219
    %v264 = vpack.c.b16 %v224, %v222
    %v265 = vpack.c.b16 %v225, %v223
    %v266 = vpack.c.b16 %v228, %v226
    %v267 = vpack.c.b16 %v229, %v227
    %v268 = vpack.c.b16 %v232, %v230
    %v269 = vpack.c.b16 %v233, %v231
    %v270 = vpack.c.b16 %v236, %v234
    %v271 = vpack.c.b16 %v237, %v235
    %v272 = vpack.c.b16 %v240, %v238
    %v273 = vpack.c.b16 %v241, %v239
    %306 = vmatprep.subr.bf16.mxu0 %v243
    %307 = vmatpush1.bf16.msra.mxu0 %v242
    %308 = vmatprep.subr.bf16.mxu0 %v245
    %309 = vmatpush1.bf16.msra.mxu0 %v244
    %310 = vmatprep.subr.bf16.mxu0 %v247
    %311 = vmatpush1.bf16.msra.mxu0 %v246
    %312 = vmatprep.subr.bf16.mxu0 %v249
    %313 = vmatpush1.bf16.msra.mxu0 %v248
    %314 = vmatprep.subr.bf16.mxu0 %v251
    %315 = vmatpush1.bf16.msra.mxu0 %v250
    %316 = vmatprep.subr.bf16.mxu0 %v253
    %317 = vmatpush1.bf16.msra.mxu0 %v252
    %318 = vmatprep.subr.bf16.mxu0 %v255
    %319 = vmatpush1.bf16.msra.mxu0 %v254
    %320 = vmatprep.subr.bf16.mxu0 %v257
    %321 = vmatpush1.bf16.msra.mxu0 %v256
    %322 = vmatprep.subr.bf16.mxu0 %v259
    %323 = vmatpush1.bf16.msra.mxu0 %v258
    %324 = vmatprep.subr.bf16.mxu0 %v261
    %325 = vmatpush1.bf16.msra.mxu0 %v260
    %326 = vmatprep.subr.bf16.mxu0 %v263
    %327 = vmatpush1.bf16.msra.mxu0 %v262
    %328 = vmatprep.subr.bf16.mxu0 %v265
    %329 = vmatpush1.bf16.msra.mxu0 %v264
    %330 = vmatprep.subr.bf16.mxu0 %v267
    %331 = vmatpush1.bf16.msra.mxu0 %v266
    %332 = vmatprep.subr.bf16.mxu0 %v269
    %333 = vmatpush1.bf16.msra.mxu0 %v268
    %334 = vmatprep.subr.bf16.mxu0 %v271
    %335 = vmatpush1.bf16.msra.mxu0 %v270
    %336 = vmatprep.subr.bf16.mxu0 %v273
    %337 = vmatpush1.bf16.msra.mxu0 %v272
    %338 = vmatprep.mubr.bf16.mxu0 %v101
    %339 = vmatmul.mubr.bf16.gmra.mrb[0].mxu0 %v100
    %v340 = vpop.f32.mrb[0].mxu0
    %v341 = vadd.f32 %v139, %v340
    %v342 = vpop.f32.mrb[0].mxu0
    %v343 = vadd.f32 %v143, %v342
    %v344 = vpop.f32.mrb[0].mxu0
    %v345 = vadd.f32 %v139, %v344
    %v346 = vpop.f32.mrb[0].mxu0
    %v347 = vadd.f32 %v143, %v346
    %348 = vdwg.mxu0
    %v349 = vmax.f32 %v341, 0.0
    %v350 = vmax.f32 %v343, 0.0
    %v351 = vmax.f32 %v345, 0.0
    %v352 = vmax.f32 %v347, 0.0
    %v353 = vpack.c.bf16 %v351, %v349
    %v354 = vpack.c.bf16 %v352, %v350
    %v355 = vld [vmem:[#allocation5] sm:$0xff]
    %v356 = vld [vmem:[#allocation5 + $0x8] sm:$0xff]
    %v357 = vld [vmem:[#allocation5 + $0x10] sm:$0xff]
    %v358 = vld [vmem:[#allocation5 + $0x18] sm:$0xff]
    %v359 = vld [vmem:[#allocation5 + $0x20] sm:$0xff]
    %v360 = vld [vmem:[#allocation5 + $0x28] sm:$0xff]
    %v361 = vld [vmem:[#allocation5 + $0x30] sm:$0xff]
    %v362 = vld [vmem:[#allocation5 + $0x38] sm:$0xff]
    %v363 = vld [vmem:[#allocation5 + $0x40] sm:$0xff]
    %v364 = vld [vmem:[#allocation5 + $0x48] sm:$0xff]
    %v365 = vld [vmem:[#allocation5 + $0x50] sm:$0xff]
    %v366 = vld [vmem:[#allocation5 + $0x58] sm:$0xff]
    %v367 = vld [vmem:[#allocation5 + $0x60] sm:$0xff]
    %v368 = vld [vmem:[#allocation5 + $0x68] sm:$0xff]
    %v369 = vld [vmem:[#allocation5 + $0x70] sm:$0xff]
    %v370 = vld [vmem:[#allocation5 + $0x78] sm:$0xff]
    %v371 = vld [vmem:[#allocation5 + $0x80] sm:$0xff]
    %v372 = vld [vmem:[#allocation5 + $0x88] sm:$0xff]
    %v373 = vld [vmem:[#allocation5 + $0x90] sm:$0xff]
    %v374 = vld [vmem:[#allocation5 + $0x98] sm:$0xff]
    %v375 = vld [vmem:[#allocation5 + $0xa0] sm:$0xff]
    %v376 = vld [vmem:[#allocation5 + $0xa8] sm:$0xff]
    %v377 = vld [vmem:[#allocation5 + $0xb0] sm:$0xff]
    %v378 = vld [vmem:[#allocation5 + $0xb8] sm:$0xff]
    %v379 = vld [vmem:[#allocation5 + $0xc0] sm:$0xff]
    %v380 = vld [vmem:[#allocation5 + $0xc8] sm:$0xff]
    %v381 = vld [vmem:[#allocation5 + $0xd0] sm:$0xff]
    %v382 = vld [vmem:[#allocation5 + $0xd8] sm:$0xff]
    %v383 = vld [vmem:[#allocation5 + $0xe0] sm:$0xff]
    %v384 = vld [vmem:[#allocation5 + $0xe8] sm:$0xff]
    %v385 = vld [vmem:[#allocation5 + $0xf0] sm:$0xff]
    %v386 = vld [vmem:[#allocation5 + $0xf8] sm:$0xff]
    %v387 = vld [vmem:[%s4] sm:$0x3]
    %v389 = vlaneseq
    %v390 = vshrl.u32 %v389, 7
    %v391 = vsub.s32 0, %v390
    %v392 = vrot.slane %v387, %v391
    %v393 = vlaneseq
    %v394 = vshrl.u32 %v393, 7
    %v395 = vsub.s32 1, %v394
    %v396 = vrot.slane %v387, %v395
    %v431 = vunpack.c.l.b16 %v355
    %v432 = vunpack.c.h.b16 %v355
    %v433 = vunpack.c.l.b16 %v356
    %v434 = vunpack.c.h.b16 %v356
    %v435 = vunpack.c.l.b16 %v357
    %v436 = vunpack.c.h.b16 %v357
    %v437 = vunpack.c.l.b16 %v358
    %v438 = vunpack.c.h.b16 %v358
    %v439 = vunpack.c.l.b16 %v359
    %v440 = vunpack.c.h.b16 %v359
    %v441 = vunpack.c.l.b16 %v360
    %v442 = vunpack.c.h.b16 %v360
    %v443 = vunpack.c.l.b16 %v361
    %v444 = vunpack.c.h.b16 %v361
    %v445 = vunpack.c.l.b16 %v362
    %v446 = vunpack.c.h.b16 %v362
    %v447 = vunpack.c.l.b16 %v363
    %v448 = vunpack.c.h.b16 %v363
    %v449 = vunpack.c.l.b16 %v364
    %v450 = vunpack.c.h.b16 %v364
    %v451 = vunpack.c.l.b16 %v365
    %v452 = vunpack.c.h.b16 %v365
    %v453 = vunpack.c.l.b16 %v366
    %v454 = vunpack.c.h.b16 %v366
    %v455 = vunpack.c.l.b16 %v367
    %v456 = vunpack.c.h.b16 %v367
    %v457 = vunpack.c.l.b16 %v368
    %v458 = vunpack.c.h.b16 %v368
    %v459 = vunpack.c.l.b16 %v369
    %v460 = vunpack.c.h.b16 %v369
    %v461 = vunpack.c.l.b16 %v370
    %v462 = vunpack.c.h.b16 %v370
    %v463 = vunpack.c.l.b16 %v371
    %v464 = vunpack.c.h.b16 %v371
    %v465 = vunpack.c.l.b16 %v372
    %v466 = vunpack.c.h.b16 %v372
    %v467 = vunpack.c.l.b16 %v373
    %v468 = vunpack.c.h.b16 %v373
    %v469 = vunpack.c.l.b16 %v374
    %v470 = vunpack.c.h.b16 %v374
    %v471 = vunpack.c.l.b16 %v375
    %v472 = vunpack.c.h.b16 %v375
    %v473 = vunpack.c.l.b16 %v376
    %v474 = vunpack.c.h.b16 %v376
    %v475 = vunpack.c.l.b16 %v377
    %v476 = vunpack.c.h.b16 %v377
    %v477 = vunpack.c.l.b16 %v378
    %v478 = vunpack.c.h.b16 %v378
    %v479 = vunpack.c.l.b16 %v379
    %v480 = vunpack.c.h.b16 %v379
    %v481 = vunpack.c.l.b16 %v380
    %v482 = vunpack.c.h.b16 %v380
    %v483 = vunpack.c.l.b16 %v381
    %v484 = vunpack.c.h.b16 %v381
    %v485 = vunpack.c.l.b16 %v382
    %v486 = vunpack.c.h.b16 %v382
    %v487 = vunpack.c.l.b16 %v383
    %v488 = vunpack.c.h.b16 %v383
    %v489 = vunpack.c.l.b16 %v384
    %v490 = vunpack.c.h.b16 %v384
    %v491 = vunpack.c.l.b16 %v385
    %v492 = vunpack.c.h.b16 %v385
    %v493 = vunpack.c.l.b16 %v386
    %v494 = vunpack.c.h.b16 %v386
    %v495 = vpack.c.b16 %v433, %v431
    %v496 = vpack.c.b16 %v434, %v432
    %v497 = vpack.c.b16 %v437, %v435
    %v498 = vpack.c.b16 %v438, %v436
    %v499 = vpack.c.b16 %v441, %v439
    %v500 = vpack.c.b16 %v442, %v440
    %v501 = vpack.c.b16 %v445, %v443
    %v502 = vpack.c.b16 %v446, %v444
    %v503 = vpack.c.b16 %v449, %v447
    %v504 = vpack.c.b16 %v450, %v448
    %v505 = vpack.c.b16 %v453, %v451
    %v506 = vpack.c.b16 %v454, %v452
    %v507 = vpack.c.b16 %v457, %v455
    %v508 = vpack.c.b16 %v458, %v456
    %v509 = vpack.c.b16 %v461, %v459
    %v510 = vpack.c.b16 %v462, %v460
    %v511 = vpack.c.b16 %v465, %v463
    %v512 = vpack.c.b16 %v466, %v464
    %v513 = vpack.c.b16 %v469, %v467
    %v514 = vpack.c.b16 %v470, %v468
    %v515 = vpack.c.b16 %v473, %v471
    %v516 = vpack.c.b16 %v474, %v472
    %v517 = vpack.c.b16 %v477, %v475
    %v518 = vpack.c.b16 %v478, %v476
    %v519 = vpack.c.b16 %v481, %v479
    %v520 = vpack.c.b16 %v482, %v480
    %v521 = vpack.c.b16 %v485, %v483
    %v522 = vpack.c.b16 %v486, %v484
    %v523 = vpack.c.b16 %v489, %v487
    %v524 = vpack.c.b16 %v490, %v488
    %v525 = vpack.c.b16 %v493, %v491
    %v526 = vpack.c.b16 %v494, %v492
    %559 = vmatprep.subr.bf16.mxu0 %v496
    %560 = vmatpush1.bf16.msra.mxu0 %v495
    %561 = vmatprep.subr.bf16.mxu0 %v498
    %562 = vmatpush1.bf16.msra.mxu0 %v497
    %563 = vmatprep.subr.bf16.mxu0 %v500
    %564 = vmatpush1.bf16.msra.mxu0 %v499
    %565 = vmatprep.subr.bf16.mxu0 %v502
    %566 = vmatpush1.bf16.msra.mxu0 %v501
    %567 = vmatprep.subr.bf16.mxu0 %v504
    %568 = vmatpush1.bf16.msra.mxu0 %v503
    %569 = vmatprep.subr.bf16.mxu0 %v506
    %570 = vmatpush1.bf16.msra.mxu0 %v505
    %571 = vmatprep.subr.bf16.mxu0 %v508
    %572 = vmatpush1.bf16.msra.mxu0 %v507
    %573 = vmatprep.subr.bf16.mxu0 %v510
    %574 = vmatpush1.bf16.msra.mxu0 %v509
    %575 = vmatprep.subr.bf16.mxu0 %v512
    %576 = vmatpush1.bf16.msra.mxu0 %v511
    %577 = vmatprep.subr.bf16.mxu0 %v514
    %578 = vmatpush1.bf16.msra.mxu0 %v513
    %579 = vmatprep.subr.bf16.mxu0 %v516
    %580 = vmatpush1.bf16.msra.mxu0 %v515
    %581 = vmatprep.subr.bf16.mxu0 %v518
    %582 = vmatpush1.bf16.msra.mxu0 %v517
    %583 = vmatprep.subr.bf16.mxu0 %v520
    %584 = vmatpush1.bf16.msra.mxu0 %v519
    %585 = vmatprep.subr.bf16.mxu0 %v522
    %586 = vmatpush1.bf16.msra.mxu0 %v521
    %587 = vmatprep.subr.bf16.mxu0 %v524
    %588 = vmatpush1.bf16.msra.mxu0 %v523
    %589 = vmatprep.subr.bf16.mxu0 %v526
    %590 = vmatpush1.bf16.msra.mxu0 %v525
    %591 = vmatprep.mubr.bf16.mxu0 %v354
    %592 = vmatmul.mubr.bf16.gmra.mrb[0].mxu0 %v353
    %v593 = vpop.f32.mrb[0].mxu0
    %v594 = vadd.f32 %v392, %v593
    %v595 = vpop.f32.mrb[0].mxu0
    %v596 = vadd.f32 %v396, %v595
    %v597 = vpop.f32.mrb[0].mxu0
    %v598 = vadd.f32 %v392, %v597
    %v599 = vpop.f32.mrb[0].mxu0
    %v600 = vadd.f32 %v396, %v599
    %601 = vdwg.mxu0
    %v602 = vmax.f32 %v594, 0.0
    %v603 = vmax.f32 %v596, 0.0
    %v604 = vmax.f32 %v598, 0.0
    %v605 = vmax.f32 %v600, 0.0
    %v606 = vpack.c.bf16 %v604, %v602
    %v607 = vpack.c.bf16 %v605, %v603
    %v608 = vld [vmem:[#allocation7] sm:$0xff]
    %v609 = vld [vmem:[#allocation7 + $0x8] sm:$0xff]
    %v610 = vld [vmem:[#allocation7 + $0x10] sm:$0xff]
    %v611 = vld [vmem:[#allocation7 + $0x18] sm:$0xff]
    %v612 = vld [vmem:[#allocation7 + $0x20] sm:$0xff]
    %v613 = vld [vmem:[#allocation7 + $0x28] sm:$0xff]
    %v614 = vld [vmem:[#allocation7 + $0x30] sm:$0xff]
    %v615 = vld [vmem:[#allocation7 + $0x38] sm:$0xff]
    %v616 = vld [vmem:[#allocation7 + $0x40] sm:$0xff]
    %v617 = vld [vmem:[#allocation7 + $0x48] sm:$0xff]
    %v618 = vld [vmem:[#allocation7 + $0x50] sm:$0xff]
    %v619 = vld [vmem:[#allocation7 + $0x58] sm:$0xff]
    %v620 = vld [vmem:[#allocation7 + $0x60] sm:$0xff]
    %v621 = vld [vmem:[#allocation7 + $0x68] sm:$0xff]
    %v622 = vld [vmem:[#allocation7 + $0x70] sm:$0xff]
    %v623 = vld [vmem:[#allocation7 + $0x78] sm:$0xff]
    %v624 = vld [vmem:[#allocation7 + $0x80] sm:$0xff]
    %v625 = vld [vmem:[#allocation7 + $0x88] sm:$0xff]
    %v626 = vld [vmem:[#allocation7 + $0x90] sm:$0xff]
    %v627 = vld [vmem:[#allocation7 + $0x98] sm:$0xff]
    %v628 = vld [vmem:[#allocation7 + $0xa0] sm:$0xff]
    %v629 = vld [vmem:[#allocation7 + $0xa8] sm:$0xff]
    %v630 = vld [vmem:[#allocation7 + $0xb0] sm:$0xff]
    %v631 = vld [vmem:[#allocation7 + $0xb8] sm:$0xff]
    %v632 = vld [vmem:[#allocation7 + $0xc0] sm:$0xff]
    %v633 = vld [vmem:[#allocation7 + $0xc8] sm:$0xff]
    %v634 = vld [vmem:[#allocation7 + $0xd0] sm:$0xff]
    %v635 = vld [vmem:[#allocation7 + $0xd8] sm:$0xff]
    %v636 = vld [vmem:[#allocation7 + $0xe0] sm:$0xff]
    %v637 = vld [vmem:[#allocation7 + $0xe8] sm:$0xff]
    %v638 = vld [vmem:[#allocation7 + $0xf0] sm:$0xff]
    %v639 = vld [vmem:[#allocation7 + $0xf8] sm:$0xff]
    %v640 = vld [vmem:[%s6] sm:$0x3]
    %v642 = vlaneseq
    %v643 = vshrl.u32 %v642, 7
    %v644 = vsub.s32 0, %v643
    %v645 = vrot.slane %v640, %v644
    %v646 = vlaneseq
    %v647 = vshrl.u32 %v646, 7
    %v648 = vsub.s32 1, %v647
    %v649 = vrot.slane %v640, %v648
    %v684 = vunpack.c.l.b16 %v608
    %v685 = vunpack.c.h.b16 %v608
    %v686 = vunpack.c.l.b16 %v609
    %v687 = vunpack.c.h.b16 %v609
    %v688 = vunpack.c.l.b16 %v610
    %v689 = vunpack.c.h.b16 %v610
    %v690 = vunpack.c.l.b16 %v611
    %v691 = vunpack.c.h.b16 %v611
    %v692 = vunpack.c.l.b16 %v612
    %v693 = vunpack.c.h.b16 %v612
    %v694 = vunpack.c.l.b16 %v613
    %v695 = vunpack.c.h.b16 %v613
    %v696 = vunpack.c.l.b16 %v614
    %v697 = vunpack.c.h.b16 %v614
    %v698 = vunpack.c.l.b16 %v615
    %v699 = vunpack.c.h.b16 %v615
    %v700 = vunpack.c.l.b16 %v616
    %v701 = vunpack.c.h.b16 %v616
    %v702 = vunpack.c.l.b16 %v617
    %v703 = vunpack.c.h.b16 %v617
    %v704 = vunpack.c.l.b16 %v618
    %v705 = vunpack.c.h.b16 %v618
    %v706 = vunpack.c.l.b16 %v619
    %v707 = vunpack.c.h.b16 %v619
    %v708 = vunpack.c.l.b16 %v620
    %v709 = vunpack.c.h.b16 %v620
    %v710 = vunpack.c.l.b16 %v621
    %v711 = vunpack.c.h.b16 %v621
    %v712 = vunpack.c.l.b16 %v622
    %v713 = vunpack.c.h.b16 %v622
    %v714 = vunpack.c.l.b16 %v623
    %v715 = vunpack.c.h.b16 %v623
    %v716 = vunpack.c.l.b16 %v624
    %v717 = vunpack.c.h.b16 %v624
    %v718 = vunpack.c.l.b16 %v625
    %v719 = vunpack.c.h.b16 %v625
    %v720 = vunpack.c.l.b16 %v626
    %v721 = vunpack.c.h.b16 %v626
    %v722 = vunpack.c.l.b16 %v627
    %v723 = vunpack.c.h.b16 %v627
    %v724 = vunpack.c.l.b16 %v628
    %v725 = vunpack.c.h.b16 %v628
    %v726 = vunpack.c.l.b16 %v629
    %v727 = vunpack.c.h.b16 %v629
    %v728 = vunpack.c.l.b16 %v630
    %v729 = vunpack.c.h.b16 %v630
    %v730 = vunpack.c.l.b16 %v631
    %v731 = vunpack.c.h.b16 %v631
    %v732 = vunpack.c.l.b16 %v632
    %v733 = vunpack.c.h.b16 %v632
    %v734 = vunpack.c.l.b16 %v633
    %v735 = vunpack.c.h.b16 %v633
    %v736 = vunpack.c.l.b16 %v634
    %v737 = vunpack.c.h.b16 %v634
    %v738 = vunpack.c.l.b16 %v635
    %v739 = vunpack.c.h.b16 %v635
    %v740 = vunpack.c.l.b16 %v636
    %v741 = vunpack.c.h.b16 %v636
    %v742 = vunpack.c.l.b16 %v637
    %v743 = vunpack.c.h.b16 %v637
    %v744 = vunpack.c.l.b16 %v638
    %v745 = vunpack.c.h.b16 %v638
    %v746 = vunpack.c.l.b16 %v639
    %v747 = vunpack.c.h.b16 %v639
    %v748 = vpack.c.b16 %v686, %v684
    %v749 = vpack.c.b16 %v687, %v685
    %v750 = vpack.c.b16 %v690, %v688
    %v751 = vpack.c.b16 %v691, %v689
    %v752 = vpack.c.b16 %v694, %v692
    %v753 = vpack.c.b16 %v695, %v693
    %v754 = vpack.c.b16 %v698, %v696
    %v755 = vpack.c.b16 %v699, %v697
    %v756 = vpack.c.b16 %v702, %v700
    %v757 = vpack.c.b16 %v703, %v701
    %v758 = vpack.c.b16 %v706, %v704
    %v759 = vpack.c.b16 %v707, %v705
    %v760 = vpack.c.b16 %v710, %v708
    %v761 = vpack.c.b16 %v711, %v709
    %v762 = vpack.c.b16 %v714, %v712
    %v763 = vpack.c.b16 %v715, %v713
    %v764 = vpack.c.b16 %v718, %v716
    %v765 = vpack.c.b16 %v719, %v717
    %v766 = vpack.c.b16 %v722, %v720
    %v767 = vpack.c.b16 %v723, %v721
    %v768 = vpack.c.b16 %v726, %v724
    %v769 = vpack.c.b16 %v727, %v725
    %v770 = vpack.c.b16 %v730, %v728
    %v771 = vpack.c.b16 %v731, %v729
    %v772 = vpack.c.b16 %v734, %v732
    %v773 = vpack.c.b16 %v735, %v733
    %v774 = vpack.c.b16 %v738, %v736
    %v775 = vpack.c.b16 %v739, %v737
    %v776 = vpack.c.b16 %v742, %v740
    %v777 = vpack.c.b16 %v743, %v741
    %v778 = vpack.c.b16 %v746, %v744
    %v779 = vpack.c.b16 %v747, %v745
    %812 = vmatprep.subr.bf16.mxu0 %v749
    %813 = vmatpush1.bf16.msra.mxu0 %v748
    %814 = vmatprep.subr.bf16.mxu0 %v751
    %815 = vmatpush1.bf16.msra.mxu0 %v750
    %816 = vmatprep.subr.bf16.mxu0 %v753
    %817 = vmatpush1.bf16.msra.mxu0 %v752
    %818 = vmatprep.subr.bf16.mxu0 %v755
    %819 = vmatpush1.bf16.msra.mxu0 %v754
    %820 = vmatprep.subr.bf16.mxu0 %v757
    %821 = vmatpush1.bf16.msra.mxu0 %v756
    %822 = vmatprep.subr.bf16.mxu0 %v759
    %823 = vmatpush1.bf16.msra.mxu0 %v758
    %824 = vmatprep.subr.bf16.mxu0 %v761
    %825 = vmatpush1.bf16.msra.mxu0 %v760
    %826 = vmatprep.subr.bf16.mxu0 %v763
    %827 = vmatpush1.bf16.msra.mxu0 %v762
    %828 = vmatprep.subr.bf16.mxu0 %v765
    %829 = vmatpush1.bf16.msra.mxu0 %v764
    %830 = vmatprep.subr.bf16.mxu0 %v767
    %831 = vmatpush1.bf16.msra.mxu0 %v766
    %832 = vmatprep.subr.bf16.mxu0 %v769
    %833 = vmatpush1.bf16.msra.mxu0 %v768
    %834 = vmatprep.subr.bf16.mxu0 %v771
    %835 = vmatpush1.bf16.msra.mxu0 %v770
    %836 = vmatprep.subr.bf16.mxu0 %v773
    %837 = vmatpush1.bf16.msra.mxu0 %v772
    %838 = vmatprep.subr.bf16.mxu0 %v775
    %839 = vmatpush1.bf16.msra.mxu0 %v774
    %840 = vmatprep.subr.bf16.mxu0 %v777
    %841 = vmatpush1.bf16.msra.mxu0 %v776
    %842 = vmatprep.subr.bf16.mxu0 %v779
    %843 = vmatpush1.bf16.msra.mxu0 %v778
    %844 = vmatprep.mubr.bf16.mxu0 %v607
    %845 = vmatmul.mubr.bf16.gmra.mrb[0].mxu0 %v606
    %v846 = vpop.f32.mrb[0].mxu0
    %v847 = vadd.f32 %v645, %v846
    %v848 = vpop.f32.mrb[0].mxu0
    %v849 = vadd.f32 %v649, %v848
    %v850 = vpop.f32.mrb[0].mxu0
    %v851 = vadd.f32 %v645, %v850
    %v852 = vpop.f32.mrb[0].mxu0
    %v853 = vadd.f32 %v649, %v852
    %854 = vdwg.mxu0
    %v855 = vmax.f32 %v847, 0.0
    %v856 = vmax.f32 %v849, 0.0
    %v857 = vmax.f32 %v851, 0.0
    %v858 = vmax.f32 %v853, 0.0
    %v859 = vpack.c.bf16 %v857, %v855
    %v860 = vpack.c.bf16 %v858, %v856
    %v861 = vld [vmem:[#allocation8] sm:$0xff]
    %v862 = vld [vmem:[#allocation8 + $0x8] sm:$0xff]
    %v863 = vld [vmem:[#allocation8 + $0x10] sm:$0xff]
    %v864 = vld [vmem:[#allocation8 + $0x18] sm:$0xff]
    %v865 = vld [vmem:[#allocation8 + $0x20] sm:$0xff]
    %v866 = vld [vmem:[#allocation8 + $0x28] sm:$0xff]
    %v867 = vld [vmem:[#allocation8 + $0x30] sm:$0xff]
    %v868 = vld [vmem:[#allocation8 + $0x38] sm:$0xff]
    %v869 = vld [vmem:[#allocation8 + $0x40] sm:$0xff]
    %v870 = vld [vmem:[#allocation8 + $0x48] sm:$0xff]
    %v871 = vld [vmem:[#allocation8 + $0x50] sm:$0xff]
    %v872 = vld [vmem:[#allocation8 + $0x58] sm:$0xff]
    %v873 = vld [vmem:[#allocation8 + $0x60] sm:$0xff]
    %v874 = vld [vmem:[#allocation8 + $0x68] sm:$0xff]
    %v875 = vld [vmem:[#allocation8 + $0x70] sm:$0xff]
    %v876 = vld [vmem:[#allocation8 + $0x78] sm:$0xff]
    %v877 = vld [vmem:[#allocation8 + $0x80] sm:$0xff]
    %v878 = vld [vmem:[#allocation8 + $0x88] sm:$0xff]
    %v879 = vld [vmem:[#allocation8 + $0x90] sm:$0xff]
    %v880 = vld [vmem:[#allocation8 + $0x98] sm:$0xff]
    %v881 = vld [vmem:[#allocation8 + $0xa0] sm:$0xff]
    %v882 = vld [vmem:[#allocation8 + $0xa8] sm:$0xff]
    %v883 = vld [vmem:[#allocation8 + $0xb0] sm:$0xff]
    %v884 = vld [vmem:[#allocation8 + $0xb8] sm:$0xff]
    %v885 = vld [vmem:[#allocation8 + $0xc0] sm:$0xff]
    %v886 = vld [vmem:[#allocation8 + $0xc8] sm:$0xff]
    %v887 = vld [vmem:[#allocation8 + $0xd0] sm:$0xff]
    %v888 = vld [vmem:[#allocation8 + $0xd8] sm:$0xff]
    %v889 = vld [vmem:[#allocation8 + $0xe0] sm:$0xff]
    %v890 = vld [vmem:[#allocation8 + $0xe8] sm:$0xff]
    %v891 = vld [vmem:[#allocation8 + $0xf0] sm:$0xff]
    %v892 = vld [vmem:[#allocation8 + $0xf8] sm:$0xff]
    %v893 = vld [vmem:[%s8] sm:$0x3]
    %v895 = vlaneseq
    %v896 = vshrl.u32 %v895, 7
    %v897 = vsub.s32 0, %v896
    %v898 = vrot.slane %v893, %v897
    %v899 = vlaneseq
    %v900 = vshrl.u32 %v899, 7
    %v901 = vsub.s32 1, %v900
    %v902 = vrot.slane %v893, %v901
    %v937 = vunpack.c.l.b16 %v861
    %v938 = vunpack.c.h.b16 %v861
    %v939 = vunpack.c.l.b16 %v862
    %v940 = vunpack.c.h.b16 %v862
    %v941 = vunpack.c.l.b16 %v863
    %v942 = vunpack.c.h.b16 %v863
    %v943 = vunpack.c.l.b16 %v864
    %v944 = vunpack.c.h.b16 %v864
    %v945 = vunpack.c.l.b16 %v865
    %v946 = vunpack.c.h.b16 %v865
    %v947 = vunpack.c.l.b16 %v866
    %v948 = vunpack.c.h.b16 %v866
    %v949 = vunpack.c.l.b16 %v867
    %v950 = vunpack.c.h.b16 %v867
    %v951 = vunpack.c.l.b16 %v868
    %v952 = vunpack.c.h.b16 %v868
    %v953 = vunpack.c.l.b16 %v869
    %v954 = vunpack.c.h.b16 %v869
    %v955 = vunpack.c.l.b16 %v870
    %v956 = vunpack.c.h.b16 %v870
    %v957 = vunpack.c.l.b16 %v871
    %v958 = vunpack.c.h.b16 %v871
    %v959 = vunpack.c.l.b16 %v872
    %v960 = vunpack.c.h.b16 %v872
    %v961 = vunpack.c.l.b16 %v873
    %v962 = vunpack.c.h.b16 %v873
    %v963 = vunpack.c.l.b16 %v874
    %v964 = vunpack.c.h.b16 %v874
    %v965 = vunpack.c.l.b16 %v875
    %v966 = vunpack.c.h.b16 %v875
    %v967 = vunpack.c.l.b16 %v876
    %v968 = vunpack.c.h.b16 %v876
    %v969 = vunpack.c.l.b16 %v877
    %v970 = vunpack.c.h.b16 %v877
    %v971 = vunpack.c.l.b16 %v878
    %v972 = vunpack.c.h.b16 %v878
    %v973 = vunpack.c.l.b16 %v879
    %v974 = vunpack.c.h.b16 %v879
    %v975 = vunpack.c.l.b16 %v880
    %v976 = vunpack.c.h.b16 %v880
    %v977 = vunpack.c.l.b16 %v881
    %v978 = vunpack.c.h.b16 %v881
    %v979 = vunpack.c.l.b16 %v882
    %v980 = vunpack.c.h.b16 %v882
    %v981 = vunpack.c.l.b16 %v883
    %v982 = vunpack.c.h.b16 %v883
    %v983 = vunpack.c.l.b16 %v884
    %v984 = vunpack.c.h.b16 %v884
    %v985 = vunpack.c.l.b16 %v885
    %v986 = vunpack.c.h.b16 %v885
    %v987 = vunpack.c.l.b16 %v886
    %v988 = vunpack.c.h.b16 %v886
    %v989 = vunpack.c.l.b16 %v887
    %v990 = vunpack.c.h.b16 %v887
    %v991 = vunpack.c.l.b16 %v888
    %v992 = vunpack.c.h.b16 %v888
    %v993 = vunpack.c.l.b16 %v889
    %v994 = vunpack.c.h.b16 %v889
    %v995 = vunpack.c.l.b16 %v890
    %v996 = vunpack.c.h.b16 %v890
    %v997 = vunpack.c.l.b16 %v891
    %v998 = vunpack.c.h.b16 %v891
    %v999 = vunpack.c.l.b16 %v892
    %v1000 = vunpack.c.h.b16 %v892
    %v1001 = vpack.c.b16 %v939, %v937
    %v1002 = vpack.c.b16 %v940, %v938
    %v1003 = vpack.c.b16 %v943, %v941
    %v1004 = vpack.c.b16 %v944, %v942
    %v1005 = vpack.c.b16 %v947, %v945
    %v1006 = vpack.c.b16 %v948, %v946
    %v1007 = vpack.c.b16 %v951, %v949
    %v1008 = vpack.c.b16 %v952, %v950
    %v1009 = vpack.c.b16 %v955, %v953
    %v1010 = vpack.c.b16 %v956, %v954
    %v1011 = vpack.c.b16 %v959, %v957
    %v1012 = vpack.c.b16 %v960, %v958
    %v1013 = vpack.c.b16 %v963, %v961
    %v1014 = vpack.c.b16 %v964, %v962
    %v1015 = vpack.c.b16 %v967, %v965
    %v1016 = vpack.c.b16 %v968, %v966
    %v1017 = vpack.c.b16 %v971, %v969
    %v1018 = vpack.c.b16 %v972, %v970
    %v1019 = vpack.c.b16 %v975, %v973
    %v1020 = vpack.c.b16 %v976, %v974
    %v1021 = vpack.c.b16 %v979, %v977
    %v1022 = vpack.c.b16 %v980, %v978
    %v1023 = vpack.c.b16 %v983, %v981
    %v1024 = vpack.c.b16 %v984, %v982
    %v1025 = vpack.c.b16 %v987, %v985
    %v1026 = vpack.c.b16 %v988, %v986
    %v1027 = vpack.c.b16 %v991, %v989
    %v1028 = vpack.c.b16 %v992, %v990
    %v1029 = vpack.c.b16 %v995, %v993
    %v1030 = vpack.c.b16 %v996, %v994
    %v1031 = vpack.c.b16 %v999, %v997
    %v1032 = vpack.c.b16 %v1000, %v998
    %1065 = vmatprep.subr.bf16.mxu0 %v1002
    %1066 = vmatpush1.bf16.msra.mxu0 %v1001
    %1067 = vmatprep.subr.bf16.mxu0 %v1004
    %1068 = vmatpush1.bf16.msra.mxu0 %v1003
    %1069 = vmatprep.subr.bf16.mxu0 %v1006
    %1070 = vmatpush1.bf16.msra.mxu0 %v1005
    %1071 = vmatprep.subr.bf16.mxu0 %v1008
    %1072 = vmatpush1.bf16.msra.mxu0 %v1007
    %1073 = vmatprep.subr.bf16.mxu0 %v1010
    %1074 = vmatpush1.bf16.msra.mxu0 %v1009
    %1075 = vmatprep.subr.bf16.mxu0 %v1012
    %1076 = vmatpush1.bf16.msra.mxu0 %v1011
    %1077 = vmatprep.subr.bf16.mxu0 %v1014
    %1078 = vmatpush1.bf16.msra.mxu0 %v1013
    %1079 = vmatprep.subr.bf16.mxu0 %v1016
    %1080 = vmatpush1.bf16.msra.mxu0 %v1015
    %1081 = vmatprep.subr.bf16.mxu0 %v1018
    %1082 = vmatpush1.bf16.msra.mxu0 %v1017
    %1083 = vmatprep.subr.bf16.mxu0 %v1020
    %1084 = vmatpush1.bf16.msra.mxu0 %v1019
    %1085 = vmatprep.subr.bf16.mxu0 %v1022
    %1086 = vmatpush1.bf16.msra.mxu0 %v1021
    %1087 = vmatprep.subr.bf16.mxu0 %v1024
    %1088 = vmatpush1.bf16.msra.mxu0 %v1023
    %1089 = vmatprep.subr.bf16.mxu0 %v1026
    %1090 = vmatpush1.bf16.msra.mxu0 %v1025
    %1091 = vmatprep.subr.bf16.mxu0 %v1028
    %1092 = vmatpush1.bf16.msra.mxu0 %v1027
    %1093 = vmatprep.subr.bf16.mxu0 %v1030
    %1094 = vmatpush1.bf16.msra.mxu0 %v1029
    %1095 = vmatprep.subr.bf16.mxu0 %v1032
    %1096 = vmatpush1.bf16.msra.mxu0 %v1031
    %1097 = vmatprep.mubr.bf16.mxu0 %v860
    %1098 = vmatmul.mubr.bf16.gmra.mrb[0].mxu0 %v859
    %v1099 = vpop.f32.mrb[0].mxu0
    %v1100 = vadd.f32 %v898, %v1099
    %v1101 = vpop.f32.mrb[0].mxu0
    %v1102 = vadd.f32 %v902, %v1101
    %v1103 = vpop.f32.mrb[0].mxu0
    %v1104 = vadd.f32 %v898, %v1103
    %v1105 = vpop.f32.mrb[0].mxu0
    %v1106 = vadd.f32 %v902, %v1105
    %1107 = vdwg.mxu0
    %v1108 = vmax.f32 %v1100, 0.0
    %v1109 = vmax.f32 %v1102, 0.0
    %v1110 = vmax.f32 %v1104, 0.0
    %v1111 = vmax.f32 %v1106, 0.0
    %v1112 = vpack.c.bf16 %v1110, %v1108
    %v1113 = vpack.c.bf16 %v1111, %v1109
    %v1114 = vld [vmem:[%s9] sm:$0xf]
    %v1115 = vld [vmem:[%s9 + $0x4] sm:$0xf]
    %v1116 = vld [vmem:[%s9 + $0x8] sm:$0xf]
    %v1117 = vld [vmem:[%s9 + $0xc] sm:$0xf]
    %v1118 = vld [vmem:[%s9 + $0x10] sm:$0xf]
    %v1119 = vld [vmem:[%s9 + $0x14] sm:$0xf]
    %v1120 = vld [vmem:[%s9 + $0x18] sm:$0xf]
    %v1121 = vld [vmem:[%s9 + $0x1c] sm:$0xf]
    %v1122 = vld [vmem:[%s9 + $0x20] sm:$0xf]
    %v1123 = vld [vmem:[%s9 + $0x24] sm:$0xf]
    %v1124 = vld [vmem:[%s9 + $0x28] sm:$0xf]
    %v1125 = vld [vmem:[%s9 + $0x2c] sm:$0xf]
    %v1126 = vld [vmem:[%s9 + $0x30] sm:$0xf]
    %v1127 = vld [vmem:[%s9 + $0x34] sm:$0xf]
    %v1128 = vld [vmem:[%s9 + $0x38] sm:$0xf]
    %v1129 = vld [vmem:[%s9 + $0x3c] sm:$0xf]
    %v1130 = vld [vmem:[%s9 + $0x40] sm:$0xf]
    %v1131 = vld [vmem:[%s9 + $0x44] sm:$0xf]
    %v1132 = vld [vmem:[%s9 + $0x48] sm:$0xf]
    %v1133 = vld [vmem:[%s9 + $0x4c] sm:$0xf]
    %v1134 = vld [vmem:[%s9 + $0x50] sm:$0xf]
    %v1135 = vld [vmem:[%s9 + $0x54] sm:$0xf]
    %v1136 = vld [vmem:[%s9 + $0x58] sm:$0xf]
    %v1137 = vld [vmem:[%s9 + $0x5c] sm:$0xf]
    %v1138 = vld [vmem:[%s9 + $0x60] sm:$0xf]
    %v1139 = vld [vmem:[%s9 + $0x64] sm:$0xf]
    %v1140 = vld [vmem:[%s9 + $0x68] sm:$0xf]
    %v1141 = vld [vmem:[%s9 + $0x6c] sm:$0xf]
    %v1142 = vld [vmem:[%s9 + $0x70] sm:$0xf]
    %v1143 = vld [vmem:[%s9 + $0x74] sm:$0xf]
    %v1144 = vld [vmem:[%s9 + $0x78] sm:$0xf]
    %v1145 = vld [vmem:[%s9 + $0x7c] sm:$0xf]
    %v1146 = vld [vmem:[#allocation2] sm:$0x1]
    %v1148 = vlaneseq
    %v1149 = vshrl.u32 %v1148, 7
    %v1150 = vsub.s32 0, %v1149
    %v1151 = vrot.slane %v1146, %v1150
    %v1185 = vunpack.c.l.b16 %v1114
    %v1186 = vunpack.c.l.b16 %v1115
    %v1187 = vunpack.c.l.b16 %v1116
    %v1188 = vunpack.c.l.b16 %v1117
    %v1189 = vunpack.c.l.b16 %v1118
    %v1190 = vunpack.c.l.b16 %v1119
    %v1191 = vunpack.c.l.b16 %v1120
    %v1192 = vunpack.c.l.b16 %v1121
    %v1193 = vunpack.c.l.b16 %v1122
    %v1194 = vunpack.c.l.b16 %v1123
    %v1195 = vunpack.c.l.b16 %v1124
    %v1196 = vunpack.c.l.b16 %v1125
    %v1197 = vunpack.c.l.b16 %v1126
    %v1198 = vunpack.c.l.b16 %v1127
    %v1199 = vunpack.c.l.b16 %v1128
    %v1200 = vunpack.c.l.b16 %v1129
    %v1201 = vunpack.c.l.b16 %v1130
    %v1202 = vunpack.c.l.b16 %v1131
    %v1203 = vunpack.c.l.b16 %v1132
    %v1204 = vunpack.c.l.b16 %v1133
    %v1205 = vunpack.c.l.b16 %v1134
    %v1206 = vunpack.c.l.b16 %v1135
    %v1207 = vunpack.c.l.b16 %v1136
    %v1208 = vunpack.c.l.b16 %v1137
    %v1209 = vunpack.c.l.b16 %v1138
    %v1210 = vunpack.c.l.b16 %v1139
    %v1211 = vunpack.c.l.b16 %v1140
    %v1212 = vunpack.c.l.b16 %v1141
    %v1213 = vunpack.c.l.b16 %v1142
    %v1214 = vunpack.c.l.b16 %v1143
    %v1215 = vunpack.c.l.b16 %v1144
    %v1216 = vunpack.c.l.b16 %v1145
    %v1217 = vpack.c.b16 %v1186, %v1185
    %v1218 = vpack.c.b16 %v1188, %v1187
    %v1219 = vpack.c.b16 %v1190, %v1189
    %v1220 = vpack.c.b16 %v1192, %v1191
    %v1221 = vpack.c.b16 %v1194, %v1193
    %v1222 = vpack.c.b16 %v1196, %v1195
    %v1223 = vpack.c.b16 %v1198, %v1197
    %v1224 = vpack.c.b16 %v1200, %v1199
    %v1225 = vpack.c.b16 %v1202, %v1201
    %v1226 = vpack.c.b16 %v1204, %v1203
    %v1227 = vpack.c.b16 %v1206, %v1205
    %v1228 = vpack.c.b16 %v1208, %v1207
    %v1229 = vpack.c.b16 %v1210, %v1209
    %v1230 = vpack.c.b16 %v1212, %v1211
    %v1231 = vpack.c.b16 %v1214, %v1213
    %v1232 = vpack.c.b16 %v1216, %v1215
    %1249 = vmatprep.subr.bf16.mxu0 0
    %1250 = vmatpush1.bf16.msra.mxu0 %v1217
    %1251 = vmatprep.subr.bf16.mxu0 0
    %1252 = vmatpush1.bf16.msra.mxu0 %v1218
    %1253 = vmatprep.subr.bf16.mxu0 0
    %1254 = vmatpush1.bf16.msra.mxu0 %v1219
    %1255 = vmatprep.subr.bf16.mxu0 0
    %1256 = vmatpush1.bf16.msra.mxu0 %v1220
    %1257 = vmatprep.subr.bf16.mxu0 0
    %1258 = vmatpush1.bf16.msra.mxu0 %v1221
    %1259 = vmatprep.subr.bf16.mxu0 0
    %1260 = vmatpush1.bf16.msra.mxu0 %v1222
    %1261 = vmatprep.subr.bf16.mxu0 0
    %1262 = vmatpush1.bf16.msra.mxu0 %v1223
    %1263 = vmatprep.subr.bf16.mxu0 0
    %1264 = vmatpush1.bf16.msra.mxu0 %v1224
    %1265 = vmatprep.subr.bf16.mxu0 0
    %1266 = vmatpush1.bf16.msra.mxu0 %v1225
    %1267 = vmatprep.subr.bf16.mxu0 0
    %1268 = vmatpush1.bf16.msra.mxu0 %v1226
    %1269 = vmatprep.subr.bf16.mxu0 0
    %1270 = vmatpush1.bf16.msra.mxu0 %v1227
    %1271 = vmatprep.subr.bf16.mxu0 0
    %1272 = vmatpush1.bf16.msra.mxu0 %v1228
    %1273 = vmatprep.subr.bf16.mxu0 0
    %1274 = vmatpush1.bf16.msra.mxu0 %v1229
    %1275 = vmatprep.subr.bf16.mxu0 0
    %1276 = vmatpush1.bf16.msra.mxu0 %v1230
    %1277 = vmatprep.subr.bf16.mxu0 0
    %1278 = vmatpush1.bf16.msra.mxu0 %v1231
    %1279 = vmatprep.subr.bf16.mxu0 0
    %1280 = vmatpush1.bf16.msra.mxu0 %v1232
    %1281 = vmatprep.mubr.bf16.mxu0 %v1113
    %1282 = vmatmul.mubr.bf16.gmra.mrb[0].mxu0 %v1112
    %v1283 = vpop.f32.mrb[0].mxu0
    %v1284 = vadd.f32 %v1151, %v1283
    %v1285 = vpop.f32.mrb[0].mxu0
    %v1286 = vpop.f32.mrb[0].mxu0
    %v1287 = vadd.f32 %v1151, %v1286
    %v1288 = vpop.f32.mrb[0].mxu0
    %1289 = vdwg.mxu0
    %v1290 = vxor.u32 %v1284, 2147483648
    %v1291 = vxor.u32 %v1287, 2147483648
    %v1292 = vmul.f32 %v1290, 1.442695
    %v1293 = vpow.pop %v1292
    %v1294 = vmul.f32 %v1291, 1.442695
    %v1295 = vpow.pop %v1294
    %v1296 = vadd.f32 %v1293, 1.0
    %v1297 = vadd.f32 %v1295, 1.0
    %v1298 = vrcp.pop %v1296
    %v1299 = vmul.f32 1.0, %v1298
    %v1300 = vrcp.pop %v1297
    %v1301 = vmul.f32 1.0, %v1300
    %vm1302 = vcmask 7168
    %1303 = vst.msk [vmem:[%s11] sm:$0xff] %vm1302, %v1299
    %1304 = vst.msk [vmem:[%s11 + $0x8] sm:$0xff] %vm1302, %v1301
    // Predicated region
    $region62: #{decoder_forward.1} parent=1 // pred_check
      _
    $region63: #{decoder_forward.1} parent=1 // pred_check_branch
      %1306 = sbr.rel (0) target = $region65
    $region64: #{decoder_forward.1} parent=1 // pred_region
      _
    $region65: #{decoder_forward.1} parent=1 // pred_fallthru
      _
    // Predicated region
    $region66: #{decoder_forward.1} parent=1 // pred_check
      _
    $region67: #{decoder_forward.1} parent=1 // pred_check_branch
      %1308 = sbr.rel (0) target = $region69
    $region68: #{decoder_forward.1} parent=1 // pred_region
      _
    $region69: #{decoder_forward.1} parent=1 // pred_fallthru
      _
    %1309 = vsyncpa [#allocation4], 1
    %1310 = vsyncpa [#allocation6], 1
    %1311 = vsyncpa [#allocation9], 1

</llo_original>
